<compile_context>
chip_gen: v7x
topology: tpu7x:2x2x1
jax: 0.10.0
libtpu: 0.0.40
codegen_flags: <defaults>
</compile_context>

<pallas_src>
import functools

import jax
import jax.numpy as jnp
import numpy as np
from jax.experimental import pallas as pl
from jax.experimental.pallas import tpu as pltpu


def _round_up(x, m):
    return (x + m - 1) // m * m


# ----------------------------- Pallas kernel ------------------------------ #

def _airl_kernel(discount,
                 state_ref, next_state_ref, action_ref, policy_ref, terminal_ref,
                 wgs_ref, wga_ref, bg_ref,
                 wh1_ref, bh1_ref, wh2_ref, bh2_ref, wh3_ref, bh3_ref,
                 d_ref):
    tb = state_ref.shape[0]
    a_dim = wga_ref.shape[1]

    s = state_ref[...]           # [TB, S]
    ns = next_state_ref[...]     # [TB, S]
    act = action_ref[...]        # [TB, 1] int32
    pol = policy_ref[...]        # [TB, 1]
    term = terminal_ref[...]     # [TB, 1]

    # ---- reward head g: one-hot built in-kernel (VPU compare), 1-wide
    #      contractions as VPU mul + XLU lane reduce (no degenerate N=1 matmul).
    lane_ids = jax.lax.broadcasted_iota(jnp.int32, (tb, a_dim), 1)
    one_hot = (lane_ids == act).astype(jnp.float32)                      # [TB, A]
    r = (jnp.sum(s * wgs_ref[...], axis=-1, keepdims=True)               # state part
         + jnp.sum(one_hot * wga_ref[...], axis=-1, keepdims=True)       # Wg_a[action]
         + bg_ref[...])                                                  # [TB, 1]

    # ---- value head h, fused over [state ; next_state]: one matmul chain.
    xh = jnp.concatenate([s, ns], axis=0)                                # [2TB, S]
    h1 = jnp.tanh(jnp.dot(xh, wh1_ref[...],
                          preferred_element_type=jnp.float32) + bh1_ref[...])
    h2 = jnp.tanh(jnp.dot(h1, wh2_ref[...],
                          preferred_element_type=jnp.float32) + bh2_ref[...])
    v = jnp.sum(h2 * wh3_ref[...], axis=-1, keepdims=True) + bh3_ref[...]  # [2TB, 1]
    v_s = v[:tb]
    v_ns = v[tb:]

    # ---- AIRL discriminator epilogue, fully in-kernel (VPU + EUP).
    f = r + (1.0 - term) * (discount * v_ns - v_s)
    f_exp = jnp.exp(f)
    d_ref[...] = f_exp / (f_exp + pol)


# ------------------------------ JAX wrapper -------------------------------- #

def init_airl_params(key, state_size, action_size, hidden_size, state_only=False):
    """nn.Linear-style init; weights stored [in, out], biases [1, out]."""
    ks = jax.random.split(key, 8)

    def linear(kw, kb, fan_in, fan_out):
        bound = 1.0 / np.sqrt(fan_in)
        w = jax.random.uniform(kw, (fan_in, fan_out), jnp.float32, -bound, bound)
        b = jax.random.uniform(kb, (1, fan_out), jnp.float32, -bound, bound)
        return w, b

    g_in = state_size if state_only else state_size + action_size
    wg, bg = linear(ks[0], ks[1], g_in, 1)
    wh1, bh1 = linear(ks[2], ks[3], state_size, hidden_size)
    wh2, bh2 = linear(ks[4], ks[5], hidden_size, hidden_size)
    wh3, bh3 = linear(ks[6], ks[7], hidden_size, 1)
    return (wg, bg, wh1, bh1, wh2, bh2, wh3, bh3)


def airl_discriminator_forward(state, action, next_state, policy, terminal, params,
                               *, discount, action_size, state_only=False,
                               block_batch=512):
    """AIRLDiscriminator.forward: returns D = exp(f) / (exp(f) + policy), shape [batch]."""
    wg, bg, wh1, bh1, wh2, bh2, wh3, bh3 = params
    batch, state_size = state.shape
    hidden = wh1.shape[1]

    # Row-vector forms of the 1-wide heads (consumed by VPU/XLU in-kernel).
    wgs_row = wg[:state_size].T.astype(jnp.float32)                  # [1, S]
    if state_only:
        wga_row = jnp.zeros((1, action_size), jnp.float32)           # action ignored
    else:
        wga_row = wg[state_size:].T.astype(jnp.float32)              # [1, A]
    wh3_row = wh3.T.astype(jnp.float32)                              # [1, H]

    # Batch tiling: TB multiple of 8 sublanes; big tiles amortize the ~0.35us
    # per-grid-step overhead while staying tiny versus scoped-VMEM limits.
    tb = min(block_batch, _round_up(batch, 8))
    b_pad = _round_up(batch, tb)

    def pad_rows(x, fill):
        if x.shape[0] == b_pad:
            return x
        filler = jnp.full((b_pad - x.shape[0],) + x.shape[1:], fill, x.dtype)
        return jnp.concatenate([x, filler], axis=0)

    s = pad_rows(state.astype(jnp.float32), 0.0)
    ns = pad_rows(next_state.astype(jnp.float32), 0.0)
    act = pad_rows(action.astype(jnp.int32).reshape(batch, 1), 0)
    pol = pad_rows(policy.astype(jnp.float32).reshape(batch, 1), 1.0)
    term = pad_rows(terminal.astype(jnp.float32).reshape(batch, 1), 1.0)

    def row_spec(cols):
        return pl.BlockSpec((tb, cols), lambda i: (i, 0))

    def whole_spec(arr):
        return pl.BlockSpec(arr.shape, lambda i: (0, 0))

    weights = (wgs_row, wga_row, bg.astype(jnp.float32),
               wh1.astype(jnp.float32), bh1.astype(jnp.float32),
               wh2.astype(jnp.float32), bh2.astype(jnp.float32),
               wh3_row, bh3.astype(jnp.float32))
    in_specs = ([row_spec(state_size), row_spec(state_size),
                 row_spec(1), row_spec(1), row_spec(1)]
                + [whole_spec(w) for w in weights])

    flops = int(2 * b_pad * (state_size + action_size + hidden)
                + 2 * (2 * b_pad) * (state_size * hidden + hidden * hidden))
    transcendentals = int(2 * (2 * b_pad) * hidden + b_pad)
    bytes_accessed = int(4 * (b_pad * (2 * state_size + 3 + 1)
                              + sum(int(w.size) for w in weights)))

    d_pad = pl.pallas_call(
        functools.partial(_airl_kernel, float(discount)),
        out_shape=jax.ShapeDtypeStruct((b_pad, 1), jnp.float32),
        grid_spec=pltpu.PrefetchScalarGridSpec(
            num_scalar_prefetch=0,
            grid=(b_pad // tb,),
            in_specs=in_specs,
            out_specs=row_spec(1)),
        compiler_params=pltpu.CompilerParams(
            dimension_semantics=("parallel",)),
        cost_estimate=pl.CostEstimate(flops=flops,
                                      transcendentals=transcendentals,
                                      bytes_accessed=bytes_accessed),
    )(s, ns, act, pol, term, *weights)

    return d_pad[:batch, 0]


def airl_predict_reward(state, action, next_state, policy, terminal, params,
                        *, discount, action_size, state_only=False):
    """log(D) - log1p(-D); trivial scalar glue left outside the kernel."""
    d = airl_discriminator_forward(state, action, next_state, policy, terminal, params,
                                   discount=discount, action_size=action_size,
                                   state_only=state_only)
    return jnp.log(d) - jnp.log1p(-d)


# ------------------------------ pure-JAX reference -------------------------- #

def ref_forward(state, action, next_state, policy, terminal, params,
                discount, action_size, state_only=False):
    wg, bg, wh1, bh1, wh2, bh2, wh3, bh3 = params
    if state_only:
        x = state
    else:
        one_hot = jax.nn.one_hot(action, action_size, dtype=jnp.float32)
        x = jnp.concatenate([state, one_hot], axis=1)
    r = jnp.sum(x * wg[:, 0], axis=1) + bg[0, 0]

    def value(z):
        y = jnp.tanh(z @ wh1 + bh1)
        y = jnp.tanh(y @ wh2 + bh2)
        return jnp.sum(y * wh3[:, 0], axis=1) + bh3[0, 0]

    f = r + (1.0 - terminal) * (discount * value(next_state) - value(state))
    fe = jnp.exp(f)
    return fe / (fe + policy)


# --------------------------------- main ------------------------------------ #

if __name__ == "__main__":
    batch = 8
    state_size = 12
    action_size = 4
    hidden_size = 32
    discount = 0.99

    root = jax.random.PRNGKey(0)
    k_params, k_s, k_ns, k_a, k_p, k_t = jax.random.split(root, 6)

    params = init_airl_params(k_params, state_size, action_size, hidden_size)

    state = jax.random.normal(k_s, (batch, state_size), jnp.float32)
    next_state = jax.random.normal(k_ns, (batch, state_size), jnp.float32)
    action = jax.random.randint(k_a, (batch,), 0, action_size, jnp.int32)
    policy = jax.random.uniform(k_p, (batch,), jnp.float32, 0.05, 1.0)
    terminal = jax.random.bernoulli(k_t, 0.2, (batch,)).astype(jnp.float32)

    fwd = jax.jit(functools.partial(airl_discriminator_forward,
                                    discount=discount, action_size=action_size))
    d = jax.block_until_ready(fwd(state, action, next_state, policy, terminal, params))
    assert d.shape == (batch,)

    d_ref = ref_forward(state, action, next_state, policy, terminal, params,
                        discount, action_size)
    np.testing.assert_allclose(np.asarray(d), np.asarray(d_ref),
                               rtol=1e-4, atol=1e-4)

    reward = jax.block_until_ready(
        airl_predict_reward(state, action, next_state, policy, terminal, params,
                            discount=discount, action_size=action_size))
    assert reward.shape == (batch,)
    assert np.all(np.isfinite(np.asarray(reward)))

    print("KERNEL_OK")
</pallas_src>

<mosaic_0001>
module attributes {stable_mosaic.version = 11 : i64} {
  func.func @_airl_kernel(%arg0: i32, %arg1: memref<8x12xf32, #tpu.memory_space<vmem>>, %arg2: memref<8x12xf32, #tpu.memory_space<vmem>>, %arg3: memref<8x1xi32, #tpu.memory_space<vmem>>, %arg4: memref<8x1xf32, #tpu.memory_space<vmem>>, %arg5: memref<8x1xf32, #tpu.memory_space<vmem>>, %arg6: memref<1x12xf32, #tpu.memory_space<vmem>>, %arg7: memref<1x4xf32, #tpu.memory_space<vmem>>, %arg8: memref<1x1xf32, #tpu.memory_space<vmem>>, %arg9: memref<12x32xf32, #tpu.memory_space<vmem>>, %arg10: memref<1x32xf32, #tpu.memory_space<vmem>>, %arg11: memref<32x32xf32, #tpu.memory_space<vmem>>, %arg12: memref<1x32xf32, #tpu.memory_space<vmem>>, %arg13: memref<1x32xf32, #tpu.memory_space<vmem>>, %arg14: memref<1x1xf32, #tpu.memory_space<vmem>>, %arg15: memref<8x1xf32, #tpu.memory_space<vmem>>) attributes {dimension_semantics = [#tpu.dimension_semantics<parallel>], iteration_bounds = array<i64: 1>, scalar_prefetch = 0 : i64, scratch_operands = 0 : i64, tpu.core_type = #tpu.core_type<tc>, window_params = [{transform_indices = @transform_0, window_bounds = array<i64: 8, 12>}, {transform_indices = @transform_1, window_bounds = array<i64: 8, 12>}, {transform_indices = @transform_2, window_bounds = array<i64: 8, 1>}, {transform_indices = @transform_3, window_bounds = array<i64: 8, 1>}, {transform_indices = @transform_4, window_bounds = array<i64: 8, 1>}, {pipeline_mode = #tpu.pipeline_mode<synchronous>, transform_indices = @transform_5, window_bounds = array<i64: 1, 12>}, {pipeline_mode = #tpu.pipeline_mode<synchronous>, transform_indices = @transform_6, window_bounds = array<i64: 1, 4>}, {pipeline_mode = #tpu.pipeline_mode<synchronous>, transform_indices = @transform_7, window_bounds = array<i64: 1, 1>}, {pipeline_mode = #tpu.pipeline_mode<synchronous>, transform_indices = @transform_8, window_bounds = array<i64: 12, 32>}, {pipeline_mode = #tpu.pipeline_mode<synchronous>, transform_indices = @transform_9, window_bounds = array<i64: 1, 32>}, {pipeline_mode = #tpu.pipeline_mode<synchronous>, transform_indices = @transform_10, window_bounds = array<i64: 32, 32>}, {pipeline_mode = #tpu.pipeline_mode<synchronous>, transform_indices = @transform_11, window_bounds = array<i64: 1, 32>}, {pipeline_mode = #tpu.pipeline_mode<synchronous>, transform_indices = @transform_12, window_bounds = array<i64: 1, 32>}, {pipeline_mode = #tpu.pipeline_mode<synchronous>, transform_indices = @transform_13, window_bounds = array<i64: 1, 1>}, {transform_indices = @transform_14, window_bounds = array<i64: 8, 1>}]} {
    %c0 = arith.constant 0 : index
    %c0_0 = arith.constant 0 : index
    %0 = vector.load %arg1[%c0, %c0_0] : memref<8x12xf32, #tpu.memory_space<vmem>>, vector<8x12xf32>
    %c0_1 = arith.constant 0 : index
    %c0_2 = arith.constant 0 : index
    %1 = vector.load %arg2[%c0_1, %c0_2] : memref<8x12xf32, #tpu.memory_space<vmem>>, vector<8x12xf32>
    %c0_3 = arith.constant 0 : index
    %c0_4 = arith.constant 0 : index
    %2 = vector.load %arg3[%c0_3, %c0_4] : memref<8x1xi32, #tpu.memory_space<vmem>>, vector<8x1xi32>
    %c0_5 = arith.constant 0 : index
    %c0_6 = arith.constant 0 : index
    %3 = vector.load %arg4[%c0_5, %c0_6] : memref<8x1xf32, #tpu.memory_space<vmem>>, vector<8x1xf32>
    %c0_7 = arith.constant 0 : index
    %c0_8 = arith.constant 0 : index
    %4 = vector.load %arg5[%c0_7, %c0_8] : memref<8x1xf32, #tpu.memory_space<vmem>>, vector<8x1xf32>
    %5 = tpu.iota {dimensions = array<i32: 1>} : vector<8x4xi32>
    %6 = vector.broadcast %2 : vector<8x1xi32> to vector<8x4xi32>
    %7 = arith.cmpi eq, %5, %6 : vector<8x4xi32>
    %8 = arith.extui %7 : vector<8x4xi1> to vector<8x4xi32>
    %9 = arith.sitofp %8 : vector<8x4xi32> to vector<8x4xf32>
    %c0_9 = arith.constant 0 : index
    %c0_10 = arith.constant 0 : index
    %10 = vector.load %arg6[%c0_9, %c0_10] : memref<1x12xf32, #tpu.memory_space<vmem>>, vector<1x12xf32>
    %11 = vector.broadcast %10 : vector<1x12xf32> to vector<8x12xf32>
    %12 = arith.mulf %0, %11 : vector<8x12xf32>
    %cst = arith.constant dense<0.000000e+00> : vector<8xf32>
    %13 = vector.multi_reduction <add>, %12, %cst [1] : vector<8x12xf32> to vector<8xf32>
    %14 = vector.shape_cast %13 : vector<8xf32> to vector<8x1xf32>
    %c0_11 = arith.constant 0 : index
    %c0_12 = arith.constant 0 : index
    %15 = vector.load %arg7[%c0_11, %c0_12] : memref<1x4xf32, #tpu.memory_space<vmem>>, vector<1x4xf32>
    %16 = vector.broadcast %15 : vector<1x4xf32> to vector<8x4xf32>
    %17 = arith.mulf %9, %16 : vector<8x4xf32>
    %cst_13 = arith.constant dense<0.000000e+00> : vector<8xf32>
    %18 = vector.multi_reduction <add>, %17, %cst_13 [1] : vector<8x4xf32> to vector<8xf32>
    %19 = vector.shape_cast %18 : vector<8xf32> to vector<8x1xf32>
    %20 = arith.addf %14, %19 : vector<8x1xf32>
    %c0_14 = arith.constant 0 : index
    %c0_15 = arith.constant 0 : index
    %21 = vector.load %arg8[%c0_14, %c0_15] : memref<1x1xf32, #tpu.memory_space<vmem>>, vector<1x1xf32>
    %22 = vector.broadcast %21 : vector<1x1xf32> to vector<8x1xf32>
    %23 = arith.addf %20, %22 : vector<8x1xf32>
    %24 = tpu.concatenate %0, %1 in 0 : vector<8x12xf32>, vector<8x12xf32> -> vector<16x12xf32>
    %c0_16 = arith.constant 0 : index
    %c0_17 = arith.constant 0 : index
    %25 = vector.load %arg9[%c0_16, %c0_17] : memref<12x32xf32, #tpu.memory_space<vmem>>, vector<12x32xf32>
    %cst_18 = arith.constant dense<0.000000e+00> : vector<16x32xf32>
    %26 = tpu.matmul %24, %25, %cst_18 {dimension_numbers = #tpu.dot_dimension_numbers<[1], [0], [0], [1], [0, 0, 1, 1], [], []>} : vector<16x12xf32>, vector<12x32xf32>, vector<16x32xf32> -> vector<16x32xf32>
    %c0_19 = arith.constant 0 : index
    %c0_20 = arith.constant 0 : index
    %27 = vector.load %arg10[%c0_19, %c0_20] : memref<1x32xf32, #tpu.memory_space<vmem>>, vector<1x32xf32>
    %28 = vector.broadcast %27 : vector<1x32xf32> to vector<16x32xf32>
    %29 = arith.addf %26, %28 : vector<16x32xf32>
    %30 = math.tanh %29 : vector<16x32xf32>
    %c0_21 = arith.constant 0 : index
    %c0_22 = arith.constant 0 : index
    %31 = vector.load %arg11[%c0_21, %c0_22] : memref<32x32xf32, #tpu.memory_space<vmem>>, vector<32x32xf32>
    %cst_23 = arith.constant dense<0.000000e+00> : vector<16x32xf32>
    %32 = tpu.matmul %30, %31, %cst_23 {dimension_numbers = #tpu.dot_dimension_numbers<[1], [0], [0], [1], [0, 0, 1, 1], [], []>} : vector<16x32xf32>, vector<32x32xf32>, vector<16x32xf32> -> vector<16x32xf32>
    %c0_24 = arith.constant 0 : index
    %c0_25 = arith.constant 0 : index
    %33 = vector.load %arg12[%c0_24, %c0_25] : memref<1x32xf32, #tpu.memory_space<vmem>>, vector<1x32xf32>
    %34 = vector.broadcast %33 : vector<1x32xf32> to vector<16x32xf32>
    %35 = arith.addf %32, %34 : vector<16x32xf32>
    %36 = math.tanh %35 : vector<16x32xf32>
    %c0_26 = arith.constant 0 : index
    %c0_27 = arith.constant 0 : index
    %37 = vector.load %arg13[%c0_26, %c0_27] : memref<1x32xf32, #tpu.memory_space<vmem>>, vector<1x32xf32>
    %38 = vector.broadcast %37 : vector<1x32xf32> to vector<16x32xf32>
    %39 = arith.mulf %36, %38 : vector<16x32xf32>
    %cst_28 = arith.constant dense<0.000000e+00> : vector<16xf32>
    %40 = vector.multi_reduction <add>, %39, %cst_28 [1] : vector<16x32xf32> to vector<16xf32>
    %41 = vector.shape_cast %40 : vector<16xf32> to vector<16x1xf32>
    %c0_29 = arith.constant 0 : index
    %c0_30 = arith.constant 0 : index
    %42 = vector.load %arg14[%c0_29, %c0_30] : memref<1x1xf32, #tpu.memory_space<vmem>>, vector<1x1xf32>
    %43 = vector.broadcast %42 : vector<1x1xf32> to vector<16x1xf32>
    %44 = arith.addf %41, %43 : vector<16x1xf32>
    %45 = vector.extract_strided_slice %44 {offsets = [0, 0], sizes = [8, 1], strides = [1, 1]} : vector<16x1xf32> to vector<8x1xf32>
    %46 = vector.extract_strided_slice %44 {offsets = [8, 0], sizes = [8, 1], strides = [1, 1]} : vector<16x1xf32> to vector<8x1xf32>
    %cst_31 = arith.constant 1.000000e+00 : f32
    %47 = vector.broadcast %cst_31 : f32 to vector<8x1xf32>
    %48 = arith.subf %47, %4 : vector<8x1xf32>
    %cst_32 = arith.constant 9.900000e-01 : f32
    %49 = vector.broadcast %cst_32 : f32 to vector<8x1xf32>
    %50 = arith.mulf %49, %46 : vector<8x1xf32>
    %51 = arith.subf %50, %45 : vector<8x1xf32>
    %52 = arith.mulf %48, %51 : vector<8x1xf32>
    %53 = arith.addf %23, %52 : vector<8x1xf32>
    %54 = math.exp %53 : vector<8x1xf32>
    %55 = arith.addf %54, %3 : vector<8x1xf32>
    %56 = arith.divf %54, %55 : vector<8x1xf32>
    %c0_33 = arith.constant 0 : index
    %c0_34 = arith.constant 0 : index
    %57 = vector.load %arg15[%c0_33, %c0_34] : memref<8x1xf32, #tpu.memory_space<vmem>>, vector<8x1xf32>
    tpu.vector_store %arg15[%c0_33, %c0_34], %56 {strides = array<i32>} : memref<8x1xf32, #tpu.memory_space<vmem>>, vector<8x1xf32>,
    return
  }
  func.func @transform_0(%arg0: i32) -> (i32, i32) {
    %c0_i32 = arith.constant 0 : i32
    %c0_i32_0 = arith.constant 0 : i32
    return %arg0, %c0_i32 : i32, i32
  }
  func.func @transform_1(%arg0: i32) -> (i32, i32) {
    %c0_i32 = arith.constant 0 : i32
    %c0_i32_0 = arith.constant 0 : i32
    return %arg0, %c0_i32 : i32, i32
  }
  func.func @transform_2(%arg0: i32) -> (i32, i32) {
    %c0_i32 = arith.constant 0 : i32
    %c0_i32_0 = arith.constant 0 : i32
    return %arg0, %c0_i32 : i32, i32
  }
  func.func @transform_3(%arg0: i32) -> (i32, i32) {
    %c0_i32 = arith.constant 0 : i32
    %c0_i32_0 = arith.constant 0 : i32
    return %arg0, %c0_i32 : i32, i32
  }
  func.func @transform_4(%arg0: i32) -> (i32, i32) {
    %c0_i32 = arith.constant 0 : i32
    %c0_i32_0 = arith.constant 0 : i32
    return %arg0, %c0_i32 : i32, i32
  }
  func.func @transform_5(%arg0: i32) -> (i32, i32) {
    %c0_i32 = arith.constant 0 : i32
    %c0_i32_0 = arith.constant 0 : i32
    %c0_i32_1 = arith.constant 0 : i32
    return %c0_i32, %c0_i32_0 : i32, i32
  }
  func.func @transform_6(%arg0: i32) -> (i32, i32) {
    %c0_i32 = arith.constant 0 : i32
    %c0_i32_0 = arith.constant 0 : i32
    %c0_i32_1 = arith.constant 0 : i32
    return %c0_i32, %c0_i32_0 : i32, i32
  }
  func.func @transform_7(%arg0: i32) -> (i32, i32) {
    %c0_i32 = arith.constant 0 : i32
    %c0_i32_0 = arith.constant 0 : i32
    %c0_i32_1 = arith.constant 0 : i32
    return %c0_i32, %c0_i32_0 : i32, i32
  }
  func.func @transform_8(%arg0: i32) -> (i32, i32) {
    %c0_i32 = arith.constant 0 : i32
    %c0_i32_0 = arith.constant 0 : i32
    %c0_i32_1 = arith.constant 0 : i32
    return %c0_i32, %c0_i32_0 : i32, i32
  }
  func.func @transform_9(%arg0: i32) -> (i32, i32) {
    %c0_i32 = arith.constant 0 : i32
    %c0_i32_0 = arith.constant 0 : i32
    %c0_i32_1 = arith.constant 0 : i32
    return %c0_i32, %c0_i32_0 : i32, i32
  }
  func.func @transform_10(%arg0: i32) -> (i32, i32) {
    %c0_i32 = arith.constant 0 : i32
    %c0_i32_0 = arith.constant 0 : i32
    %c0_i32_1 = arith.constant 0 : i32
    return %c0_i32, %c0_i32_0 : i32, i32
  }
  func.func @transform_11(%arg0: i32) -> (i32, i32) {
    %c0_i32 = arith.constant 0 : i32
    %c0_i32_0 = arith.constant 0 : i32
    %c0_i32_1 = arith.constant 0 : i32
    return %c0_i32, %c0_i32_0 : i32, i32
  }
  func.func @transform_12(%arg0: i32) -> (i32, i32) {
    %c0_i32 = arith.constant 0 : i32
    %c0_i32_0 = arith.constant 0 : i32
    %c0_i32_1 = arith.constant 0 : i32
    return %c0_i32, %c0_i32_0 : i32, i32
  }
  func.func @transform_13(%arg0: i32) -> (i32, i32) {
    %c0_i32 = arith.constant 0 : i32
    %c0_i32_0 = arith.constant 0 : i32
    %c0_i32_1 = arith.constant 0 : i32
    return %c0_i32, %c0_i32_0 : i32, i32
  }
  func.func @transform_14(%arg0: i32) -> (i32, i32) {
    %c0_i32 = arith.constant 0 : i32
    %c0_i32_0 = arith.constant 0 : i32
    return %arg0, %c0_i32 : i32, i32
  }
}

</mosaic_0001>

<llo_original>
// kernel: airl_discriminator_forward.1
$region0: #{airl_discriminator_forward.1}
  #allocation0 [shape = 'u32[]', space=smem, size = 0x4, offset = 0x4, fixed_abs, tag = 'smem constant byte address 0x4 - core index']
  #allocation1 [shape = 'u32[144,128]{1,0:T(1,128)}', space=vmem, size = 0x12000, scoped, tag = 'internal scratch']
  #allocation2 [shape = 'f32[1,1]{1,0:T(1,128)S(1)}', space=vmem, size = 0x200, scoped, tag = 'scoped memory for airl_discriminator_forward.1']
  #allocation3 [shape = 'f32[1,1]{1,0:T(1,128)S(1)}', space=vmem, size = 0x200, scoped, tag = 'scoped memory for airl_discriminator_forward.1']
  %s0 = inlined_call_operand.vmem [shape: f32[8,12], index: 0, kind: input, shape index: {}]
  %s1 = inlined_call_operand.vmem [shape: f32[8,12], index: 1, kind: input, shape index: {}]
  %s2 = inlined_call_operand.vmem [shape: s32[8,1], index: 2, kind: input, shape index: {}]
  %s3 = inlined_call_operand.vmem [shape: f32[8,1], index: 3, kind: input, shape index: {}]
  %s4 = inlined_call_operand.vmem [shape: f32[8,1], index: 4, kind: input, shape index: {}]
  %s5 = inlined_call_operand.vmem [shape: f32[1,12], index: 5, kind: input, shape index: {}]
  %s6 = inlined_call_operand.vmem [shape: f32[1,4], index: 6, kind: input, shape index: {}]
  %s7 = inlined_call_operand.<no memory space> [shape: f32[1,1], index: 7, kind: input, shape index: {}]
  %s8 = inlined_call_operand.vmem [shape: f32[12,32], index: 8, kind: input, shape index: {}]
  %s9 = inlined_call_operand.vmem [shape: f32[1,32], index: 9, kind: input, shape index: {}]
  %s10 = inlined_call_operand.vmem [shape: f32[32,32], index: 10, kind: input, shape index: {}]
  %s11 = inlined_call_operand.vmem [shape: f32[1,32], index: 11, kind: input, shape index: {}]
  %s12 = inlined_call_operand.vmem [shape: f32[1,32], index: 12, kind: input, shape index: {}]
  %s13 = inlined_call_operand.<no memory space> [shape: f32[1,1], index: 13, kind: input, shape index: {}]
  %s14 = inlined_call_operand.vmem [shape: f32[8,1], index: 14, kind: output, shape index: {}]
  %s15 = sld [smem:[#allocation0]]
  $region66: #{airl_discriminator_forward.1} parent=0
    _
  %s17 = ssub.s32 1, %s15
  %s18 = scalar_select 0, %s17, %s15
  %v19 = vstv %s7
  %20 = vst [vmem:[#allocation2] sm:$0x1] %v19
  %v21 = vstv %s13
  %22 = vst [vmem:[#allocation3] sm:$0x1] %v21
  // Predicated region
  $region2: #{airl_discriminator_forward.1} parent=0 // pred_check
    _
  $region3: #{airl_discriminator_forward.1} parent=0 // pred_check_branch
    %24 = sbr.rel (0) target = $region5
  $region4: #{airl_discriminator_forward.1} parent=0 // pred_region
    _
  $region5: #{airl_discriminator_forward.1} parent=0 // pred_fallthru
    _
  // Predicated region
  $region6: #{airl_discriminator_forward.1} parent=0 // pred_check
    _
  $region7: #{airl_discriminator_forward.1} parent=0 // pred_check_branch
    %26 = sbr.rel (0) target = $region9
  $region8: #{airl_discriminator_forward.1} parent=0 // pred_region
    _
  $region9: #{airl_discriminator_forward.1} parent=0 // pred_fallthru
    _
  // Predicated region
  $region10: #{airl_discriminator_forward.1} parent=0 // pred_check
    _
  $region11: #{airl_discriminator_forward.1} parent=0 // pred_check_branch
    %28 = sbr.rel (0) target = $region13
  $region12: #{airl_discriminator_forward.1} parent=0 // pred_region
    _
  $region13: #{airl_discriminator_forward.1} parent=0 // pred_fallthru
    _
  // Predicated region
  $region14: #{airl_discriminator_forward.1} parent=0 // pred_check
    _
  $region15: #{airl_discriminator_forward.1} parent=0 // pred_check_branch
    %30 = sbr.rel (0) target = $region17
  $region16: #{airl_discriminator_forward.1} parent=0 // pred_region
    _
  $region17: #{airl_discriminator_forward.1} parent=0 // pred_fallthru
    _
  // Predicated region
  $region18: #{airl_discriminator_forward.1} parent=0 // pred_check
    _
  $region19: #{airl_discriminator_forward.1} parent=0 // pred_check_branch
    %32 = sbr.rel (0) target = $region21
  $region20: #{airl_discriminator_forward.1} parent=0 // pred_region
    _
  $region21: #{airl_discriminator_forward.1} parent=0 // pred_fallthru
    _
  // Predicated region
  $region22: #{airl_discriminator_forward.1} parent=0 // pred_check
    _
  $region23: #{airl_discriminator_forward.1} parent=0 // pred_check_branch
    %34 = sbr.rel (0) target = $region25
  $region24: #{airl_discriminator_forward.1} parent=0 // pred_region
    _
  $region25: #{airl_discriminator_forward.1} parent=0 // pred_fallthru
    _
  // Predicated region
  $region26: #{airl_discriminator_forward.1} parent=0 // pred_check
    _
  $region27: #{airl_discriminator_forward.1} parent=0 // pred_check_branch
    %36 = sbr.rel (0) target = $region29
  $region28: #{airl_discriminator_forward.1} parent=0 // pred_region
    _
  $region29: #{airl_discriminator_forward.1} parent=0 // pred_fallthru
    _
  // Predicated region
  $region30: #{airl_discriminator_forward.1} parent=0 // pred_check
    _
  $region31: #{airl_discriminator_forward.1} parent=0 // pred_check_branch
    %38 = sbr.rel (0) target = $region33
  $region32: #{airl_discriminator_forward.1} parent=0 // pred_region
    _
  $region33: #{airl_discriminator_forward.1} parent=0 // pred_fallthru
    _
  // Predicated region
  $region34: #{airl_discriminator_forward.1} parent=0 // pred_check
    _
  $region35: #{airl_discriminator_forward.1} parent=0 // pred_check_branch
    %40 = sbr.rel (0) target = $region37
  $region36: #{airl_discriminator_forward.1} parent=0 // pred_region
    _
  $region37: #{airl_discriminator_forward.1} parent=0 // pred_fallthru
    _
  // Predicated region
  $region38: #{airl_discriminator_forward.1} parent=0 // pred_check
    _
  $region39: #{airl_discriminator_forward.1} parent=0 // pred_check_branch
    %42 = sbr.rel (0) target = $region41
  $region40: #{airl_discriminator_forward.1} parent=0 // pred_region
    _
  $region41: #{airl_discriminator_forward.1} parent=0 // pred_fallthru
    _
  // Predicated region
  $region42: #{airl_discriminator_forward.1} parent=0 // pred_check
    _
  $region43: #{airl_discriminator_forward.1} parent=0 // pred_check_branch
    %44 = sbr.rel (0) target = $region45
  $region44: #{airl_discriminator_forward.1} parent=0 // pred_region
    _
  $region45: #{airl_discriminator_forward.1} parent=0 // pred_fallthru
    _
  // Predicated region
  $region46: #{airl_discriminator_forward.1} parent=0 // pred_check
    _
  $region47: #{airl_discriminator_forward.1} parent=0 // pred_check_branch
    %46 = sbr.rel (0) target = $region49
  $region48: #{airl_discriminator_forward.1} parent=0 // pred_region
    _
  $region49: #{airl_discriminator_forward.1} parent=0 // pred_fallthru
    _
  // Predicated region
  $region50: #{airl_discriminator_forward.1} parent=0 // pred_check
    _
  $region51: #{airl_discriminator_forward.1} parent=0 // pred_check_branch
    %48 = sbr.rel (0) target = $region53
  $region52: #{airl_discriminator_forward.1} parent=0 // pred_region
    _
  $region53: #{airl_discriminator_forward.1} parent=0 // pred_fallthru
    _
  // Predicated region
  $region54: #{airl_discriminator_forward.1} parent=0 // pred_check
    _
  $region55: #{airl_discriminator_forward.1} parent=0 // pred_check_branch
    %50 = sbr.rel (0) target = $region57
  $region56: #{airl_discriminator_forward.1} parent=0 // pred_region
    _
  $region57: #{airl_discriminator_forward.1} parent=0 // pred_fallthru
    _
  %v51 = vld [vmem:[%s0] sm:$0xff]
  %v52 = vld [vmem:[%s1] sm:$0xff]
  %v53 = vld [vmem:[%s2] sm:$0xff]
  %v54 = vld [vmem:[%s3] sm:$0xff]
  %v55 = vld [vmem:[%s4] sm:$0xff]
  %v56 = vlaneseq
  %v57 = vand.u32 %v56, 127
  %58 = vset.pattern.permute.xlu0 0
  %59 = vperm.xlu0 %58, %v53
  %v60 = vpop.permute.xlu0 %59
  %vm61 = vcmp.eq.s32.totalorder %v57, %v60
  %v62 = vsel %vm61, 1, 0
  %v63 = vcvt.s32.f32 %v62
  %v64 = vld [vmem:[%s5] sm:$0x1]
  %v66 = vlaneseq
  %v67 = vshrl.u32 %v66, 7
  %v68 = vsub.s32 0, %v67
  %v69 = vrot.slane %v64, %v68
  %v71 = vmul.f32 %v51, %v69
  %vm72 = vcmask 97280
  %v73 = vsel %vm72, %v71, 0.0
  %74 = vadd.xlane.f32.xlu0 %v73
  %v75 = vpop.xlane.xlu0 %74
  %v76 = vld [vmem:[%s6] sm:$0x1]
  %v78 = vlaneseq
  %v79 = vshrl.u32 %v78, 7
  %v80 = vsub.s32 0, %v79
  %v81 = vrot.slane %v76, %v80
  %v83 = vmul.f32 %v63, %v81
  %vm84 = vcmask 31744
  %v85 = vsel %vm84, %v83, 0.0
  %86 = vadd.xlane.f32.xlu0 %v85
  %v87 = vpop.xlane.xlu0 %86
  %v88 = vadd.f32 %v75, %v87
  %v89 = vld [vmem:[#allocation2] sm:$0x1]
  %v91 = vlaneseq
  %v92 = vshrl.u32 %v91, 7
  %v93 = vsub.s32 0, %v92
  %v94 = vrot.slane %v89, %v93
  %v96 = vadd.f32 %v88, %v94
  %v97 = vld [vmem:[%s8] sm:$0xff]
  %v98 = vld [vmem:[%s8 + $0x8] sm:$0xf]
  %v99 = vld [vmem:[%s9] sm:$0x1]
  %v101 = vlaneseq
  %v102 = vshrl.u32 %v101, 7
  %v103 = vsub.s32 0, %v102
  %v104 = vrot.slane %v99, %v103
  %v107 = vsel %vm72, %v51, 0
  %v110 = vsel %vm72, %v52, 0
  %vm112 = vcmask 1043456
  %v114 = vsel %vm112, %v98, 0
  %116 = vmatprep.subr.mxu0 0.0
  %117 = vmatpush1.msra.mxu0 %v97
  %118 = vmatprep.subr.mxu0 0.0
  %119 = vmatpush1.msra.mxu0 %v114
  %120 = vmatprep.subr.mxu0 0.0
  %121 = vmatpush1.msra.mxu0 0.0
  %122 = vmatprep.subr.mxu0 0.0
  %123 = vmatpush1.msra.mxu0 0.0
  %124 = vmatprep.subr.mxu0 0.0
  %125 = vmatpush1.msra.mxu0 0.0
  %126 = vmatprep.subr.mxu0 0.0
  %127 = vmatpush1.msra.mxu0 0.0
  %128 = vmatprep.subr.mxu0 0.0
  %129 = vmatpush1.msra.mxu0 0.0
  %130 = vmatprep.subr.mxu0 0.0
  %131 = vmatpush1.msra.mxu0 0.0
  %132 = vmatprep.subr.mxu0 0.0
  %133 = vmatpush1.msra.mxu0 0.0
  %134 = vmatprep.subr.mxu0 0.0
  %135 = vmatpush1.msra.mxu0 0.0
  %136 = vmatprep.subr.mxu0 0.0
  %137 = vmatpush1.msra.mxu0 0.0
  %138 = vmatprep.subr.mxu0 0.0
  %139 = vmatpush1.msra.mxu0 0.0
  %140 = vmatprep.subr.mxu0 0.0
  %141 = vmatpush1.msra.mxu0 0.0
  %142 = vmatprep.subr.mxu0 0.0
  %143 = vmatpush1.msra.mxu0 0.0
  %144 = vmatprep.subr.mxu0 0.0
  %145 = vmatpush1.msra.mxu0 0.0
  %146 = vmatprep.subr.mxu0 0.0
  %147 = vmatpush1.msra.mxu0 0.0
  %148 = vmatprep.subr.mxu0 0.0
  %149 = vmatpush1.msra.mxu0 0.0
  %150 = vmatprep.subr.mxu0 0.0
  %151 = vmatpush1.msra.mxu0 0.0
  %152 = vmatprep.subr.mxu0 0.0
  %153 = vmatpush1.msra.mxu0 0.0
  %154 = vmatprep.subr.mxu0 0.0
  %155 = vmatpush1.msra.mxu0 0.0
  %156 = vmatprep.subr.mxu0 0.0
  %157 = vmatpush1.msra.mxu0 0.0
  %158 = vmatprep.subr.mxu0 0.0
  %159 = vmatpush1.msra.mxu0 0.0
  %160 = vmatprep.subr.mxu0 0.0
  %161 = vmatpush1.msra.mxu0 0.0
  %162 = vmatprep.subr.mxu0 0.0
  %163 = vmatpush1.msra.mxu0 0.0
  %164 = vmatprep.subr.mxu0 0.0
  %165 = vmatpush1.msra.mxu0 0.0
  %166 = vmatprep.subr.mxu0 0.0
  %167 = vmatpush1.msra.mxu0 0.0
  %168 = vmatprep.subr.mxu0 0.0
  %169 = vmatpush1.msra.mxu0 0.0
  %170 = vmatprep.subr.mxu0 0.0
  %171 = vmatpush1.msra.mxu0 0.0
  %172 = vmatprep.subr.mxu0 0.0
  %173 = vmatpush1.msra.mxu0 0.0
  %174 = vmatprep.subr.mxu0 0.0
  %175 = vmatpush1.msra.mxu0 0.0
  %176 = vmatprep.subr.mxu0 0.0
  %177 = vmatpush1.msra.mxu0 0.0
  %178 = vmatprep.subr.mxu0 0.0
  %179 = vmatpush1.msra.mxu0 0.0
  %180 = vmatprep.mubr.f32.mxu0 0.0
  %181 = vmatmul.mubr.f32.gmra.mrb[0].mxu0 %v107
  %v182 = vpop.f32.mrb[0].mxu0
  %v183 = vadd.f32 %v104, %v182
  %v184 = vpop.f32.mrb[0].mxu0
  %185 = vmatprep.mubr.f32.mxu0 0.0
  %186 = vmatmul.mubr.f32.gmra.mrb[0].mxu0 %v110
  %v187 = vpop.f32.mrb[0].mxu0
  %v188 = vadd.f32 %v104, %v187
  %v189 = vpop.f32.mrb[0].mxu0
  %190 = vdwg.mxu0
  %v191 = vtanh.pop %v183
  %v192 = vtanh.pop %v188
  %v193 = vld [vmem:[%s10] sm:$0xff]
  %v194 = vld [vmem:[%s10 + $0x8] sm:$0xff]
  %v195 = vld [vmem:[%s10 + $0x10] sm:$0xff]
  %v196 = vld [vmem:[%s10 + $0x18] sm:$0xff]
  %v197 = vld [vmem:[%s11] sm:$0x1]
  %v199 = vlaneseq
  %v200 = vshrl.u32 %v199, 7
  %v201 = vsub.s32 0, %v200
  %v202 = vrot.slane %v197, %v201
  %vm204 = vcmask 261120
  %v206 = vsel %vm204, %v191, 0
  %v209 = vsel %vm204, %v192, 0
  %211 = vmatprep.subr.mxu0 0.0
  %212 = vmatpush1.msra.mxu0 %v193
  %213 = vmatprep.subr.mxu0 0.0
  %214 = vmatpush1.msra.mxu0 %v194
  %215 = vmatprep.subr.mxu0 0.0
  %216 = vmatpush1.msra.mxu0 %v195
  %217 = vmatprep.subr.mxu0 0.0
  %218 = vmatpush1.msra.mxu0 %v196
  %219 = vmatprep.subr.mxu0 0.0
  %220 = vmatpush1.msra.mxu0 0.0
  %221 = vmatprep.subr.mxu0 0.0
  %222 = vmatpush1.msra.mxu0 0.0
  %223 = vmatprep.subr.mxu0 0.0
  %224 = vmatpush1.msra.mxu0 0.0
  %225 = vmatprep.subr.mxu0 0.0
  %226 = vmatpush1.msra.mxu0 0.0
  %227 = vmatprep.subr.mxu0 0.0
  %228 = vmatpush1.msra.mxu0 0.0
  %229 = vmatprep.subr.mxu0 0.0
  %230 = vmatpush1.msra.mxu0 0.0
  %231 = vmatprep.subr.mxu0 0.0
  %232 = vmatpush1.msra.mxu0 0.0
  %233 = vmatprep.subr.mxu0 0.0
  %234 = vmatpush1.msra.mxu0 0.0
  %235 = vmatprep.subr.mxu0 0.0
  %236 = vmatpush1.msra.mxu0 0.0
  %237 = vmatprep.subr.mxu0 0.0
  %238 = vmatpush1.msra.mxu0 0.0
  %239 = vmatprep.subr.mxu0 0.0
  %240 = vmatpush1.msra.mxu0 0.0
  %241 = vmatprep.subr.mxu0 0.0
  %242 = vmatpush1.msra.mxu0 0.0
  %243 = vmatprep.subr.mxu0 0.0
  %244 = vmatpush1.msra.mxu0 0.0
  %245 = vmatprep.subr.mxu0 0.0
  %246 = vmatpush1.msra.mxu0 0.0
  %247 = vmatprep.subr.mxu0 0.0
  %248 = vmatpush1.msra.mxu0 0.0
  %249 = vmatprep.subr.mxu0 0.0
  %250 = vmatpush1.msra.mxu0 0.0
  %251 = vmatprep.subr.mxu0 0.0
  %252 = vmatpush1.msra.mxu0 0.0
  %253 = vmatprep.subr.mxu0 0.0
  %254 = vmatpush1.msra.mxu0 0.0
  %255 = vmatprep.subr.mxu0 0.0
  %256 = vmatpush1.msra.mxu0 0.0
  %257 = vmatprep.subr.mxu0 0.0
  %258 = vmatpush1.msra.mxu0 0.0
  %259 = vmatprep.subr.mxu0 0.0
  %260 = vmatpush1.msra.mxu0 0.0
  %261 = vmatprep.subr.mxu0 0.0
  %262 = vmatpush1.msra.mxu0 0.0
  %263 = vmatprep.subr.mxu0 0.0
  %264 = vmatpush1.msra.mxu0 0.0
  %265 = vmatprep.subr.mxu0 0.0
  %266 = vmatpush1.msra.mxu0 0.0
  %267 = vmatprep.subr.mxu0 0.0
  %268 = vmatpush1.msra.mxu0 0.0
  %269 = vmatprep.subr.mxu0 0.0
  %270 = vmatpush1.msra.mxu0 0.0
  %271 = vmatprep.subr.mxu0 0.0
  %272 = vmatpush1.msra.mxu0 0.0
  %273 = vmatprep.subr.mxu0 0.0
  %274 = vmatpush1.msra.mxu0 0.0
  %275 = vmatprep.mubr.f32.mxu0 0.0
  %276 = vmatmul.mubr.f32.gmra.mrb[0].mxu0 %v206
  %v277 = vpop.f32.mrb[0].mxu0
  %v278 = vadd.f32 %v202, %v277
  %v279 = vpop.f32.mrb[0].mxu0
  %280 = vmatprep.mubr.f32.mxu0 0.0
  %281 = vmatmul.mubr.f32.gmra.mrb[0].mxu0 %v209
  %v282 = vpop.f32.mrb[0].mxu0
  %v283 = vadd.f32 %v202, %v282
  %v284 = vpop.f32.mrb[0].mxu0
  %285 = vdwg.mxu0
  %v286 = vtanh.pop %v278
  %v287 = vtanh.pop %v283
  %v288 = vld [vmem:[%s12] sm:$0x1]
  %v290 = vlaneseq
  %v291 = vshrl.u32 %v290, 7
  %v292 = vsub.s32 0, %v291
  %v293 = vrot.slane %v288, %v292
  %v295 = vmul.f32 %v286, %v293
  %v296 = vmul.f32 %v287, %v293
  %v297 = vsel %vm204, %v295, 0.0
  %298 = vadd.xlane.f32.xlu0 %v297
  %v299 = vpop.xlane.xlu0 %298
  %v300 = vsel %vm204, %v296, 0.0
  %301 = vadd.xlane.f32.xlu0 %v300
  %v302 = vpop.xlane.xlu0 %301
  %v303 = vld [vmem:[#allocation3] sm:$0x1]
  %v305 = vlaneseq
  %v306 = vshrl.u32 %v305, 7
  %v307 = vsub.s32 0, %v306
  %v308 = vrot.slane %v303, %v307
  %v310 = vadd.f32 %v299, %v308
  %v311 = vadd.f32 %v302, %v308
  %v312 = vsub.f32 1.0, %v55
  %v313 = vmul.f32 %v311, 0.99
  %v314 = vsub.f32 %v313, %v310
  %v315 = vmul.f32 %v312, %v314
  %v316 = vadd.f32 %v96, %v315
  %v317 = vmul.f32 %v316, 1.442695
  %v318 = vpow.pop %v317
  %v319 = vadd.f32 %v318, %v54
  %v320 = vrcp.pop %v319
  %v321 = vmul.f32 %v318, %v320
  %vm322 = vcmask 7168
  %323 = vst.msk [vmem:[%s14] sm:$0xff] %vm322, %v321
  // Predicated region
  $region58: #{airl_discriminator_forward.1} parent=0 // pred_check
    _
  $region59: #{airl_discriminator_forward.1} parent=0 // pred_check_branch
    %325 = sbr.rel (0) target = $region61
  $region60: #{airl_discriminator_forward.1} parent=0 // pred_region
    _
  $region61: #{airl_discriminator_forward.1} parent=0 // pred_fallthru
    _
  // Predicated region
  $region62: #{airl_discriminator_forward.1} parent=0 // pred_check
    _
  $region63: #{airl_discriminator_forward.1} parent=0 // pred_check_branch
    %327 = sbr.rel (0) target = $region65
  $region64: #{airl_discriminator_forward.1} parent=0 // pred_region
    _
  $region65: #{airl_discriminator_forward.1} parent=0 // pred_fallthru
    _

</llo_original>
